<compile_context>
chip_gen: v7x
topology: tpu7x:2x2x1
jax: 0.10.0
libtpu: 0.0.40
codegen_flags: <defaults>
</compile_context>

<pallas_src>
import functools

import numpy as np
import jax
import jax.numpy as jnp
from jax.experimental import pallas as pl
from jax.experimental.pallas import tpu as pltpu


def _round_up(x, m):
    return ((x + m - 1) // m) * m


# ----------------------------------------------------------------------------
# Pallas kernel 1: tiled (rows x K) @ (K x N) + bias, optional ReLU.
# Used for the fused (train+test) 1x1 head-feature conv.
# ----------------------------------------------------------------------------
def _mm_bias_act_kernel(x_ref, w_ref, b_ref, o_ref, *, relu):
    acc = jnp.dot(x_ref[...], w_ref[...], preferred_element_type=jnp.float32)
    acc = acc + b_ref[...]
    if relu:
        acc = jnp.maximum(acc, 0.0)
    o_ref[...] = acc


def pallas_linear(x, w, b, *, relu=False):
    M, K = x.shape
    N = w.shape[1]
    # Collapsed grid: one step for small problems, else large parallel row
    # tiles (keeps >=2 steps for the v7x dual-TensorCore case at M > 1024).
    tm = _round_up(M, 8) if M <= 1024 else 1024
    Mp = _round_up(M, tm)
    if Mp != M:
        x = jnp.pad(x, ((0, Mp - M), (0, 0)))
    out = pl.pallas_call(
        functools.partial(_mm_bias_act_kernel, relu=relu),
        out_shape=jax.ShapeDtypeStruct((Mp, N), jnp.float32),
        grid=(Mp // tm,),
        in_specs=[
            pl.BlockSpec((tm, K), lambda i: (i, 0)),
            pl.BlockSpec((K, N), lambda i: (0, 0)),
            pl.BlockSpec((1, N), lambda i: (0, 0)),
        ],
        out_specs=pl.BlockSpec((tm, N), lambda i: (i, 0)),
        compiler_params=pltpu.CompilerParams(dimension_semantics=("parallel",)),
    )(x, w, b)
    return out[:M] if Mp != M else out


# ----------------------------------------------------------------------------
# Pallas kernel 2: 3x3 conv (pad=1) + bias + ReLU, one image per grid step.
# The padded image is read once per image as (H+2, (W+2)*C) rows; the conv is
# expressed as 3 row-shifted matmuls against a banded weight (built once in
# the wrapper), producing a lane-dense (H, W*C_out) NHWC-flat output.
# No im2col tensor is ever materialized in HBM.
# ----------------------------------------------------------------------------
def _conv3x3_kernel(x_ref, w_ref, b_ref, o_ref, *, H):
    acc = jnp.dot(x_ref[0:H, :], w_ref[0], preferred_element_type=jnp.float32)
    acc = acc + jnp.dot(x_ref[1:H + 1, :], w_ref[1],
                        preferred_element_type=jnp.float32)
    acc = acc + jnp.dot(x_ref[2:H + 2, :], w_ref[2],
                        preferred_element_type=jnp.float32)
    o_ref[...] = jnp.maximum(acc + b_ref[...], 0.0)


def pallas_conv3x3_relu(x_pad_flat, w_band, b_tiled, H, W, out_ch):
    N, Hp, WpC = x_pad_flat.shape
    return pl.pallas_call(
        functools.partial(_conv3x3_kernel, H=H),
        out_shape=jax.ShapeDtypeStruct((N, H, W * out_ch), jnp.float32),
        grid=(N,),
        in_specs=[
            pl.BlockSpec((None, Hp, WpC), lambda n: (n, 0, 0)),
            pl.BlockSpec((3, WpC, W * out_ch), lambda n: (0, 0, 0)),
            pl.BlockSpec((1, W * out_ch), lambda n: (0, 0)),
        ],
        out_specs=pl.BlockSpec((None, H, W * out_ch), lambda n: (n, 0, 0)),
        compiler_params=pltpu.CompilerParams(dimension_semantics=("parallel",)),
    )(x_pad_flat, w_band, b_tiled)


# ----------------------------------------------------------------------------
# Pallas kernel 3: fused ToMP-style head (all-MXU, lane-dense outputs).
# Grid = (S, n_te), te innermost ("arbitrary") so the train block / mask are
# fetched once per sequence and the combined weight is cached in VMEM scratch.
# Per (s, te):
#   filt      = mask_norm @ train_z                      (8, D) (rows identical)
#   Wc        = filt * w_sel      (row0=filt, rows1-4=filt*W_reg^T, rows5-7=0)
#   out(8,HW) = Wc @ test_z^T + b_c ; rows 1..7 ReLU'd, row 0 = raw score.
# ----------------------------------------------------------------------------
def _head_kernel(mask_ref, train_ref, test_ref, wsel_ref, bc_ref, out_ref,
                 wc_sc):
    te = pl.program_id(1)

    @pl.when(te == 0)
    def _():
        # (8, n_tr*HW) @ (n_tr*HW, D) -> (8, D); mask rows are replicated so
        # every row equals the pooled filter.
        filt = jnp.dot(mask_ref[...], train_ref[...],
                       preferred_element_type=jnp.float32)
        wc_sc[...] = filt * wsel_ref[...]          # combined score+bbox weight

    out = jnp.dot(wc_sc[...], test_ref[...],
                  preferred_element_type=jnp.float32)        # (8, HW)
    out = out + bc_ref[...]
    row = jax.lax.broadcasted_iota(jnp.int32, out.shape, 0)
    out_ref[...] = jnp.where(row == 0, out, jnp.maximum(out, 0.0))


def pallas_tomp_head(mask8, train_z, test_zT, w_sel, b_c):
    # mask8: (S, 8, n_tr*HW)  train_z: (S, n_tr*HW, D)
    # test_zT: (S, n_te, D, HW)  w_sel: (8, D)  b_c: (8, 1)
    S, THW, D = train_z.shape
    _, n_te, _, HW = test_zT.shape
    return pl.pallas_call(
        _head_kernel,
        out_shape=jax.ShapeDtypeStruct((n_te, S, 8, HW), jnp.float32),
        grid=(S, n_te),
        in_specs=[
            pl.BlockSpec((None, 8, THW), lambda s, te: (s, 0, 0)),
            pl.BlockSpec((None, THW, D), lambda s, te: (s, 0, 0)),
            pl.BlockSpec((None, None, D, HW), lambda s, te: (s, te, 0, 0)),
            pl.BlockSpec((8, D), lambda s, te: (0, 0)),
            pl.BlockSpec((8, 1), lambda s, te: (0, 0)),
        ],
        out_specs=pl.BlockSpec((None, None, 8, HW), lambda s, te: (te, s, 0, 0)),
        scratch_shapes=[pltpu.VMEM((8, D), jnp.float32)],
        compiler_params=pltpu.CompilerParams(
            dimension_semantics=("parallel", "arbitrary")),
    )(mask8, train_z, test_zT, w_sel, b_c)


# ----------------------------------------------------------------------------
# Glue (plain JAX): gaussian target mask, parameter containers.
# ----------------------------------------------------------------------------
def _gaussian_mask(bb, H, W):
    """bb: (n_tr, S, 4) as (x, y, w, h) -> gaussian target mask (n_tr, S, H*W)."""
    cx = bb[..., 0] + bb[..., 2] * 0.5
    cy = bb[..., 1] + bb[..., 3] * 0.5
    sigma = 0.25 * jnp.sqrt(jnp.clip(bb[..., 2] * bb[..., 3], 1e-3)) + 1e-3
    ys = jnp.arange(H, dtype=jnp.float32)
    xs = jnp.arange(W, dtype=jnp.float32)
    dy = ys[None, None, :, None] - cy[..., None, None]
    dx = xs[None, None, None, :] - cx[..., None, None]
    g = jnp.exp(-(dy ** 2 + dx ** 2) / (2.0 * (sigma[..., None, None] ** 2)))
    n_tr, S = bb.shape[:2]
    return g.reshape(n_tr, S, H * W).astype(jnp.float32)


class Backbone:
    """3x3 conv + ReLU feature extractor, returns a dict of NHWC feature maps."""

    def __init__(self, key, in_ch=3, out_ch=32):
        k1, k2 = jax.random.split(key)
        w9 = 0.1 * jax.random.normal(k1, (3, 3, in_ch, out_ch), jnp.float32)
        b = 0.01 * jax.random.normal(k2, (out_ch,), jnp.float32)
        self._w9_np = np.asarray(w9)
        self._b_np = np.asarray(b)
        self.in_ch, self.out_ch = in_ch, out_ch
        self._band_cache = {}

    def _banded(self, W):
        """Banded conv-as-matmul weight (3, (W+2)*C, W*OUT) + tiled bias."""
        if W not in self._band_cache:
            C, OUT = self.in_ch, self.out_ch
            Wp = W + 2
            eye = np.zeros((3, Wp, W), np.float32)
            for dx in range(3):
                eye[dx, dx:dx + W, :] = np.eye(W, dtype=np.float32)
            band = np.einsum('dpx,ydco->ypcxo', eye, self._w9_np)
            band = band.reshape(3, Wp * C, W * OUT)
            b_tiled = np.tile(self._b_np, W).reshape(1, W * OUT)
            self._band_cache[W] = (jnp.asarray(band), jnp.asarray(b_tiled))
        return self._band_cache[W]

    def __call__(self, im, layers):
        N, C, H, W = im.shape
        x = jnp.transpose(im, (0, 2, 3, 1))                      # NHWC
        x = jnp.pad(x, ((0, 0), (1, 1), (1, 1), (0, 0)))          # (N,H+2,W+2,C)
        x = x.reshape(N, H + 2, (W + 2) * C)
        w_band, b_tiled = self._banded(W)
        feat = pallas_conv3x3_relu(x, w_band, b_tiled, H, W, self.out_ch)
        feat = feat.reshape(N, H, W, self.out_ch)                 # NHWC
        return {l: feat for l in layers}


class Head:
    """ToMP-style head: head-feat 1x1 conv, filter pooling, correlation, bbox reg."""

    def __init__(self, key, feat_ch=32, head_dim=32):
        k1, k2, k3, k4 = jax.random.split(key, 4)
        self.w_hf = 0.1 * jax.random.normal(k1, (feat_ch, head_dim), jnp.float32)
        self.b_hf = 0.01 * jax.random.normal(k2, (1, head_dim), jnp.float32)
        self.w_reg = 0.1 * jax.random.normal(k3, (head_dim, 4), jnp.float32)
        self.b_reg = 0.01 * jax.random.normal(k4, (4,), jnp.float32)
        self.head_dim = head_dim

    def extract_head_feat(self, feat_nhwc):
        N, H, W, C = feat_nhwc.shape
        z = pallas_linear(feat_nhwc.reshape(-1, C), self.w_hf, self.b_hf)
        return z.reshape(N, H, W, self.head_dim)

    def __call__(self, train_feat, test_feat, train_bb, *args, **kwargs):
        n_tr, S = train_bb.shape[0], train_bb.shape[1]
        Ntr, H, W, C = train_feat.shape
        n_te = test_feat.shape[0] // S
        HW = H * W
        D = self.head_dim

        # Fused 1x1 head-feat conv: train + test in ONE pallas_call.
        x_all = jnp.concatenate(
            [train_feat.reshape(-1, C), test_feat.reshape(-1, C)], axis=0)
        z_all = pallas_linear(x_all, self.w_hf, self.b_hf, relu=False)
        n_tr_rows = Ntr * HW
        z_tr = z_all[:n_tr_rows].reshape(n_tr, S, HW, D)
        z_te = z_all[n_tr_rows:].reshape(n_te, S, HW, D)

        # Per-sequence layouts for the head kernel.
        train_z = jnp.transpose(z_tr, (1, 0, 2, 3)).reshape(S, n_tr * HW, D)
        test_zT = jnp.transpose(z_te, (1, 0, 3, 2))          # (S, n_te, D, HW)

        # Normalized gaussian mask, replicated to 8 rows for a full-tile matmul.
        mask = _gaussian_mask(train_bb, H, W)                 # (n_tr, S, HW)
        mflat = jnp.transpose(mask, (1, 0, 2)).reshape(S, n_tr * HW)
        mflat = mflat / (jnp.sum(mflat, axis=-1, keepdims=True) + 1e-6)
        mask8 = jnp.broadcast_to(mflat[:, None, :], (S, 8, n_tr * HW))

        # Combined head weight selector / bias:
        #  row 0 -> score (weight = filt, bias 0, no ReLU)
        #  rows 1..4 -> bbox (weight = filt * W_reg^T, bias b_reg, ReLU)
        #  rows 5..7 -> padding (zeros).
        w_sel = jnp.concatenate(
            [jnp.ones((1, D), jnp.float32), self.w_reg.T,
             jnp.zeros((3, D), jnp.float32)], axis=0)          # (8, D)
        b_c = jnp.concatenate(
            [jnp.zeros((1, 1), jnp.float32), self.b_reg.reshape(4, 1),
             jnp.zeros((3, 1), jnp.float32)], axis=0)          # (8, 1)

        out5 = pallas_tomp_head(mask8, train_z, test_zT, w_sel, b_c)
        test_scores = out5[:, :, 0, :].reshape(n_te, S, H, W)
        bbox_preds = out5[:, :, 1:5, :].reshape(n_te, S, 4, H, W)
        return test_scores, bbox_preds


class ToMPnet:
    """JAX mirror of the PyTorch ToMPnet wrapper."""

    def __init__(self, feature_extractor, head, head_layer):
        self.feature_extractor = feature_extractor
        self.head = head
        self.head_layer = [head_layer] if isinstance(head_layer, str) else head_layer
        self.output_layers = sorted(list(set(self.head_layer)))

    def forward(self, train_imgs, test_imgs, train_bb, *args, **kwargs):
        assert train_imgs.ndim == 5 and test_imgs.ndim == 5, 'Expect 5 dimensional inputs'
        train_feat = self.extract_backbone_features(
            train_imgs.reshape(-1, *train_imgs.shape[-3:]))
        test_feat = self.extract_backbone_features(
            test_imgs.reshape(-1, *test_imgs.shape[-3:]))
        train_feat_head = self.get_backbone_head_feat(train_feat)
        test_feat_head = self.get_backbone_head_feat(test_feat)
        test_scores, bbox_preds = self.head(train_feat_head, test_feat_head,
                                            train_bb, *args, **kwargs)
        return (test_scores, bbox_preds)

    def get_backbone_head_feat(self, backbone_feat):
        feat = {l: backbone_feat[l] for l in self.head_layer}
        if len(self.head_layer) == 1:
            return feat[self.head_layer[0]]
        return feat

    def extract_backbone_features(self, im, layers=None):
        if layers is None:
            layers = self.output_layers
        return self.feature_extractor(im, layers)


# TODO(synk): the original backbone (ResNet) and transformer-based ToMP head are
# external submodules passed to __init__; they are replaced here with small
# synthetic equivalents that preserve the wrapper's forward-pass structure.

if __name__ == "__main__":
    key = jax.random.PRNGKey(0)
    kb, kh, k1, k2, k3, k4 = jax.random.split(key, 6)

    backbone = Backbone(kb, in_ch=3, out_ch=32)
    head = Head(kh, feat_ch=32, head_dim=32)
    net = ToMPnet(backbone, head, head_layer='layer3')

    n_tr, n_te, S, H, W = 2, 2, 2, 16, 16
    train_imgs = jax.random.normal(k1, (n_tr, S, 3, H, W), jnp.float32)
    test_imgs = jax.random.normal(k2, (n_te, S, 3, H, W), jnp.float32)
    xy = jax.random.uniform(k3, (n_tr, S, 2), minval=2.0, maxval=6.0)
    wh = jax.random.uniform(k4, (n_tr, S, 2), minval=3.0, maxval=8.0)
    train_bb = jnp.concatenate([xy, wh], axis=-1)   # (x, y, w, h)

    test_scores, bbox_preds = net.forward(train_imgs, test_imgs, train_bb)
    jax.block_until_ready((test_scores, bbox_preds))

    assert test_scores.shape == (n_te, S, H, W), test_scores.shape
    assert bbox_preds.shape == (n_te, S, 4, H, W), bbox_preds.shape
    assert jnp.all(jnp.isfinite(test_scores)) and jnp.all(jnp.isfinite(bbox_preds))
    print("KERNEL_OK")
</pallas_src>

<mosaic_0001>
module attributes {stable_mosaic.version = 11 : i64} {
  func.func @_conv3x3_kernel(%arg0: i32, %arg1: memref<1x18x54xf32, #tpu.memory_space<vmem>>, %arg2: memref<3x54x512xf32, #tpu.memory_space<vmem>>, %arg3: memref<1x512xf32, #tpu.memory_space<vmem>>, %arg4: memref<1x16x512xf32, #tpu.memory_space<vmem>>) attributes {dimension_semantics = [#tpu.dimension_semantics<parallel>], iteration_bounds = array<i64: 4>, scalar_prefetch = 0 : i64, scratch_operands = 0 : i64, tpu.core_type = #tpu.core_type<tc>, window_params = [{transform_indices = @transform_0, window_bounds = array<i64: 1, 18, 54>}, {pipeline_mode = #tpu.pipeline_mode<synchronous>, transform_indices = @transform_1, window_bounds = array<i64: 3, 54, 512>}, {pipeline_mode = #tpu.pipeline_mode<synchronous>, transform_indices = @transform_2, window_bounds = array<i64: 1, 512>}, {transform_indices = @transform_3, window_bounds = array<i64: 1, 16, 512>}]} {
    %c0 = arith.constant 0 : index
    %c0_0 = arith.constant 0 : index
    %c0_1 = arith.constant 0 : index
    %0 = vector.load %arg1[%c0, %c0_0, %c0_1] : memref<1x18x54xf32, #tpu.memory_space<vmem>>, vector<1x16x54xf32>
    %1 = vector.shape_cast %0 : vector<1x16x54xf32> to vector<16x54xf32>
    %c0_2 = arith.constant 0 : index
    %c0_3 = arith.constant 0 : index
    %c0_4 = arith.constant 0 : index
    %2 = vector.load %arg2[%c0_2, %c0_3, %c0_4] : memref<3x54x512xf32, #tpu.memory_space<vmem>>, vector<1x54x512xf32>
    %3 = vector.shape_cast %2 : vector<1x54x512xf32> to vector<54x512xf32>
    %cst = arith.constant dense<0.000000e+00> : vector<16x512xf32>
    %4 = tpu.matmul %1, %3, %cst {dimension_numbers = #tpu.dot_dimension_numbers<[1], [0], [0], [1], [0, 0, 1, 1], [], []>} : vector<16x54xf32>, vector<54x512xf32>, vector<16x512xf32> -> vector<16x512xf32>
    %c0_5 = arith.constant 0 : index
    %c1 = arith.constant 1 : index
    %c0_6 = arith.constant 0 : index
    %5 = vector.load %arg1[%c0_5, %c1, %c0_6] : memref<1x18x54xf32, #tpu.memory_space<vmem>>, vector<1x16x54xf32>
    %6 = vector.shape_cast %5 : vector<1x16x54xf32> to vector<16x54xf32>
    %c1_7 = arith.constant 1 : index
    %c0_8 = arith.constant 0 : index
    %c0_9 = arith.constant 0 : index
    %7 = vector.load %arg2[%c1_7, %c0_8, %c0_9] : memref<3x54x512xf32, #tpu.memory_space<vmem>>, vector<1x54x512xf32>
    %8 = vector.shape_cast %7 : vector<1x54x512xf32> to vector<54x512xf32>
    %cst_10 = arith.constant dense<0.000000e+00> : vector<16x512xf32>
    %9 = tpu.matmul %6, %8, %cst_10 {dimension_numbers = #tpu.dot_dimension_numbers<[1], [0], [0], [1], [0, 0, 1, 1], [], []>} : vector<16x54xf32>, vector<54x512xf32>, vector<16x512xf32> -> vector<16x512xf32>
    %10 = arith.addf %4, %9 : vector<16x512xf32>
    %c0_11 = arith.constant 0 : index
    %c2 = arith.constant 2 : index
    %c0_12 = arith.constant 0 : index
    %11 = vector.load %arg1[%c0_11, %c2, %c0_12] : memref<1x18x54xf32, #tpu.memory_space<vmem>>, vector<1x16x54xf32>
    %12 = vector.shape_cast %11 : vector<1x16x54xf32> to vector<16x54xf32>
    %c2_13 = arith.constant 2 : index
    %c0_14 = arith.constant 0 : index
    %c0_15 = arith.constant 0 : index
    %13 = vector.load %arg2[%c2_13, %c0_14, %c0_15] : memref<3x54x512xf32, #tpu.memory_space<vmem>>, vector<1x54x512xf32>
    %14 = vector.shape_cast %13 : vector<1x54x512xf32> to vector<54x512xf32>
    %cst_16 = arith.constant dense<0.000000e+00> : vector<16x512xf32>
    %15 = tpu.matmul %12, %14, %cst_16 {dimension_numbers = #tpu.dot_dimension_numbers<[1], [0], [0], [1], [0, 0, 1, 1], [], []>} : vector<16x54xf32>, vector<54x512xf32>, vector<16x512xf32> -> vector<16x512xf32>
    %16 = arith.addf %10, %15 : vector<16x512xf32>
    %c0_17 = arith.constant 0 : index
    %c0_18 = arith.constant 0 : index
    %17 = vector.load %arg3[%c0_17, %c0_18] : memref<1x512xf32, #tpu.memory_space<vmem>>, vector<1x512xf32>
    %18 = vector.broadcast %17 : vector<1x512xf32> to vector<16x512xf32>
    %19 = arith.addf %16, %18 : vector<16x512xf32>
    %cst_19 = arith.constant 0.000000e+00 : f32
    %20 = vector.broadcast %cst_19 : f32 to vector<16x512xf32>
    %21 = arith.maximumf %19, %20 : vector<16x512xf32>
    %c0_20 = arith.constant 0 : index
    %c0_21 = arith.constant 0 : index
    %c0_22 = arith.constant 0 : index
    %22 = vector.load %arg4[%c0_20, %c0_21, %c0_22] : memref<1x16x512xf32, #tpu.memory_space<vmem>>, vector<1x16x512xf32>
    %23 = vector.shape_cast %22 : vector<1x16x512xf32> to vector<16x512xf32>
    %24 = vector.shape_cast %21 : vector<16x512xf32> to vector<1x16x512xf32>
    tpu.vector_store %arg4[%c0_20, %c0_21, %c0_22], %24 {strides = array<i32>} : memref<1x16x512xf32, #tpu.memory_space<vmem>>, vector<1x16x512xf32>,
    return
  }
  func.func @transform_0(%arg0: i32) -> (i32, i32, i32) {
    %c0_i32 = arith.constant 0 : i32
    %c0_i32_0 = arith.constant 0 : i32
    %c0_i32_1 = arith.constant 0 : i32
    return %arg0, %c0_i32, %c0_i32_0 : i32, i32, i32
  }
  func.func @transform_1(%arg0: i32) -> (i32, i32, i32) {
    %c0_i32 = arith.constant 0 : i32
    %c0_i32_0 = arith.constant 0 : i32
    %c0_i32_1 = arith.constant 0 : i32
    %c0_i32_2 = arith.constant 0 : i32
    return %c0_i32, %c0_i32_0, %c0_i32_1 : i32, i32, i32
  }
  func.func @transform_2(%arg0: i32) -> (i32, i32) {
    %c0_i32 = arith.constant 0 : i32
    %c0_i32_0 = arith.constant 0 : i32
    %c0_i32_1 = arith.constant 0 : i32
    return %c0_i32, %c0_i32_0 : i32, i32
  }
  func.func @transform_3(%arg0: i32) -> (i32, i32, i32) {
    %c0_i32 = arith.constant 0 : i32
    %c0_i32_0 = arith.constant 0 : i32
    %c0_i32_1 = arith.constant 0 : i32
    return %arg0, %c0_i32, %c0_i32_0 : i32, i32, i32
  }
}

</mosaic_0001>

<llo_original>
// kernel: tpu_custom_call.1
$region0: #{tpu_custom_call.1}
  #allocation0 [shape = 'u32[]', space=smem, size = 0x4, offset = 0x4, fixed_abs, tag = 'smem constant byte address 0x4 - core index']
  #allocation1 [shape = 'u32[144,128]{1,0:T(1,128)}', space=vmem, size = 0x12000, scoped, tag = 'internal scratch']
  %s0 = inlined_call_operand.vmem [shape: f32[4,18,54], index: 0, kind: input, shape index: {}]
  %s1 = inlined_call_operand.hbm [shape: f32[3,54,512], index: 1, kind: input, shape index: {}]
  %s2 = inlined_call_operand.vmem [shape: f32[1,512], index: 2, kind: input, shape index: {}]
  %s3 = inlined_call_operand.hbm [shape: f32[4,16,512], index: 3, kind: output, shape index: {}]
  %s4 = sld [smem:[#allocation0]]
  $region49: #{tpu_custom_call.1} parent=0
    _
  %s6 = ssub.s32 1, %s4
  %s7 = scalar_select 0, %s6, %s4
  $region1: #{tpu_custom_call.1} parent=0
    #allocation2 [shape = 'u8[344064]{0}', space=vmem, size = 0x54000, scoped, tag = 'input window, operand 1, single buffered']
    #allocation3 [shape = 's32[2]{0}', space=sflag, size = 0x8, scoped, tag = 'scoped memory for tpu_custom_call.1']
    #allocation4 [shape = 's32[2]{0}', space=sflag, size = 0x8, scoped, tag = 'scoped memory for tpu_custom_call.1']
    #allocation5 [shape = 'u8[65536]{0}', space=vmem, size = 0x10000, scoped, tag = 'output window, operand 0']
    %8 = vsyncpa [#allocation3], 0
    %9 = vsyncpa [#allocation4], 0
    %s10 = scalar_lea.sflag [#allocation4], 1
    %11 = vsyncpa %s10, 0
    loop: start=0, step=1, limit=6
    $region2: #{tpu_custom_call.1} parent=1 // loop_pre_header
      _
    $region3: #{tpu_custom_call.1} parent=1 // loop_header
      %s13 = sphi 0, %s17
      %p14 = scmp.ge.s32.totalorder %s13, 6
      %s23 = sphi 0, %s25
      %s26 = sphi 0, %s23
      %s27 = sphi 0, %s26
      %s43 = sphi 0, %s27
      %s47 = sphi 0, %s47
      %s49 = sphi 0, %s47
      %s50 = sphi 0, %s49
      %s64 = sphi 0, %s50
      %s68 = sphi 0, %s68
      %s70 = sphi 0, %s68
      %s71 = sphi 0, %s70
      %s85 = sphi 0, %s71
      %s91 = sphi 0, %s93
      %s94 = sphi 0, %s91
      %s95 = sphi 0, %s94
      %s111 = sphi 0, %s95
    $region4: #{tpu_custom_call.1} parent=1 // loop_header_branch
      %16 = sbr.rel (%p14) target = $region8
    $region5: #{tpu_custom_call.1} parent=1 // loop_body
      %s18 = ssub.s32 %s13, 1
      %s19 = ssub.s32 %s13, 2
      %s20 = sadd.s32 %s13, 1
      %s21 = ssub.s32 %s13, %s20
      %p22 = scmp.eq.s32.totalorder %s21, 0
      %s24 = sadd.s32 %s23, 1
      %s25 = scalar_select %p22, %s23, %s24
      %p28 = pneg %p22
      %p29 = scmp.eq.s32.totalorder %s13, 3
      %p30 = por %p28, %p29
      %p31 = scmp.ne.s32.totalorder %s23, %s26
      %p32 = scmp.eq.s32.totalorder %s13, 0
      %p33 = por %p31, %p32
      %p34 = scmp.ne.s32.totalorder %s23, %s26
      %p35 = scmp.eq.s32.totalorder %s18, 3
      %p36 = por %p34, %p35
      %p37 = scmp.ne.s32.totalorder %s26, %s27
      %p38 = scmp.eq.s32.totalorder %s18, 0
      %p39 = por %p37, %p38
      %p40 = scmp.ne.s32.totalorder %s26, %s27
      %p41 = scmp.eq.s32.totalorder %s19, 3
      %p42 = por %p40, %p41
      %p44 = scmp.ne.s32.totalorder %s27, %s43
      %p45 = scmp.eq.s32.totalorder %s19, 0
      %p46 = por %p44, %p45
      %s48 = sadd.s32 %s47, 1
      %p51 = scmp.eq.s32.totalorder %s13, 3
      %p52 = scmp.ne.s32.totalorder %s47, %s49
      %p53 = scmp.eq.s32.totalorder %s13, 0
      %p54 = por %p52, %p53
      %p55 = scmp.ne.s32.totalorder %s47, %s49
      %p56 = scmp.eq.s32.totalorder %s18, 3
      %p57 = por %p55, %p56
      %p58 = scmp.ne.s32.totalorder %s49, %s50
      %p59 = scmp.eq.s32.totalorder %s18, 0
      %p60 = por %p58, %p59
      %p61 = scmp.ne.s32.totalorder %s49, %s50
      %p62 = scmp.eq.s32.totalorder %s19, 3
      %p63 = por %p61, %p62
      %p65 = scmp.ne.s32.totalorder %s50, %s64
      %p66 = scmp.eq.s32.totalorder %s19, 0
      %p67 = por %p65, %p66
      %s69 = sadd.s32 %s68, 1
      %p72 = scmp.eq.s32.totalorder %s13, 3
      %p73 = scmp.ne.s32.totalorder %s68, %s70
      %p74 = scmp.eq.s32.totalorder %s13, 0
      %p75 = por %p73, %p74
      %p76 = scmp.ne.s32.totalorder %s68, %s70
      %p77 = scmp.eq.s32.totalorder %s18, 3
      %p78 = por %p76, %p77
      %p79 = scmp.ne.s32.totalorder %s70, %s71
      %p80 = scmp.eq.s32.totalorder %s18, 0
      %p81 = por %p79, %p80
      %p82 = scmp.ne.s32.totalorder %s70, %s71
      %p83 = scmp.eq.s32.totalorder %s19, 3
      %p84 = por %p82, %p83
      %p86 = scmp.ne.s32.totalorder %s71, %s85
      %p87 = scmp.eq.s32.totalorder %s19, 0
      %p88 = por %p86, %p87
      %s89 = ssub.s32 %s13, %s20
      %p90 = scmp.eq.s32.totalorder %s89, 0
      %s92 = sadd.s32 %s91, 1
      %s93 = scalar_select %p90, %s91, %s92
      %p96 = pneg %p90
      %p97 = scmp.eq.s32.totalorder %s13, 3
      %p98 = por %p96, %p97
      %p99 = scmp.ne.s32.totalorder %s91, %s94
      %p100 = scmp.eq.s32.totalorder %s13, 0
      %p101 = por %p99, %p100
      %p102 = scmp.ne.s32.totalorder %s91, %s94
      %p103 = scmp.eq.s32.totalorder %s18, 3
      %p104 = por %p102, %p103
      %p105 = scmp.ne.s32.totalorder %s94, %s95
      %p106 = scmp.eq.s32.totalorder %s18, 0
      %p107 = por %p105, %p106
      %p108 = scmp.ne.s32.totalorder %s94, %s95
      %p109 = scmp.eq.s32.totalorder %s19, 3
      %p110 = por %p108, %p109
      %p112 = scmp.ne.s32.totalorder %s95, %s111
      %p113 = scmp.eq.s32.totalorder %s19, 0
      %p114 = por %p112, %p113
      %p115 = scmp.le.s32.totalorder 1, %s13
      %p116 = scmp.lt.s32.totalorder %s13, 5
      %p117 = pnand %p115, %p116
      %p118 = pneg %p117
      // Predicated region
      $region9: #{tpu_custom_call.1} parent=5 // pred_check
        _
      $region10: #{tpu_custom_call.1} parent=5 // pred_check_branch
        %120 = sbr.rel (%p117) target = $region12
      $region11: #{tpu_custom_call.1} parent=5 // pred_region
        %s121 = ssub.s32 %s13, 1
        // Predicated region
        $region13: #{tpu_custom_call.1} parent=11 // pred_check
          %p122 = pneg %p60
        $region14: #{tpu_custom_call.1} parent=11 // pred_check_branch
          %124 = sbr.rel (%p122) target = $region16
        $region15: #{tpu_custom_call.1} parent=11 // pred_region
          %s126 = ssub.s32 10752, 10752
          %127 = vsyncadd [#allocation3], %s126
          %s128 = sshll.u32 [#allocation2], 4
          %s129 = int_to_ptr.vmem [resolvable:$true] %s128
          %134 = dma.hbm_to_vmem [thread:$0]  %s1, 10752, %s129, [#allocation3], 512, 512, 32
        $region16: #{tpu_custom_call.1} parent=11 // pred_fallthru
          _
        // Predicated region
        $region17: #{tpu_custom_call.1} parent=11 // pred_check
          %p135 = pneg %p81
        $region18: #{tpu_custom_call.1} parent=11 // pred_check_branch
          %137 = sbr.rel (%p135) target = $region20
        $region19: #{tpu_custom_call.1} parent=11 // pred_region
          _
        $region20: #{tpu_custom_call.1} parent=11 // pred_fallthru
          _
      $region12: #{tpu_custom_call.1} parent=5 // pred_fallthru
        _
      %p138 = scmp.lt.s32.totalorder %s13, 4
      // Predicated region
      $region21: #{tpu_custom_call.1} parent=5 // pred_check
        %p139 = pneg %p138
      $region22: #{tpu_custom_call.1} parent=5 // pred_check_branch
        %141 = sbr.rel (%p139) target = $region24
      $region23: #{tpu_custom_call.1} parent=5 // pred_region
        // Predicated region
        $region25: #{tpu_custom_call.1} parent=23 // pred_check
          %p142 = pneg %p33
        $region26: #{tpu_custom_call.1} parent=23 // pred_check_branch
          %144 = sbr.rel (%p142) target = $region28
        $region27: #{tpu_custom_call.1} parent=23 // pred_region
          %p145 = scmp.lt.s32.totalorder %s13, 3
          %s146 = scalar_select %p145, %s13, 3
          %s147 = smul.addr %s146, 3
          %s148 = smul.addr %s147, 8
          %s149 = scalar_lea.vmem %s0, %s148
        $region28: #{tpu_custom_call.1} parent=23 // pred_fallthru
          _
      $region24: #{tpu_custom_call.1} parent=5 // pred_fallthru
        _
      %p150 = scmp.le.s32.totalorder 1, %s13
      %p151 = scmp.lt.s32.totalorder %s13, 5
      %p152 = pnand %p150, %p151
      %p153 = pneg %p152
      // Predicated region
      $region29: #{tpu_custom_call.1} parent=5 // pred_check
        _
      $region30: #{tpu_custom_call.1} parent=5 // pred_check_branch
        %155 = sbr.rel (%p152) target = $region32
      $region31: #{tpu_custom_call.1} parent=5 // pred_region
        %s156 = ssub.s32 %s13, 1
        // Predicated region
        $region33: #{tpu_custom_call.1} parent=31 // pred_check
          %p157 = pneg %p60
        $region34: #{tpu_custom_call.1} parent=31 // pred_check_branch
          %159 = sbr.rel (%p157) target = $region36
        $region35: #{tpu_custom_call.1} parent=31 // pred_region
          %160 = dma.done [#allocation3], 10752
        $region36: #{tpu_custom_call.1} parent=31 // pred_fallthru
          _
        %p161 = scmp.lt.s32.totalorder %s18, 3
        %s162 = scalar_select %p161, %s18, 3
        %s163 = smul.addr %s162, 3
        %s164 = smul.addr %s163, 8
        %s165 = scalar_lea.vmem %s0, %s164
        %p166 = pneg %p39
        %p167 = pneg %p36
        %p168 = pneg %p60
        %p169 = pneg %p57
        %p170 = pneg %p81
        %p171 = pneg %p78
        %p172 = pneg %p107
        %p173 = pneg %p104
        %s174 = sand.u32 %s94, 1
        %s175 = scalar_lea.sflag [#allocation4], %s174
        %s176 = sand.u32 %s94, 1
        %s177 = smul.addr %s176, 64
        %s178 = scalar_lea.vmem [#allocation5], %s177
        %p179 = scmp.lt.s32.totalorder %s18, 3
        %s180 = scalar_select %p179, %s18, 3
        %s181 = smul.addr %s180, 3
        %s182 = smul.addr %s181, 8
        %s183 = scalar_lea.vmem %s0, %s182
        %v184 = vld [vmem:[%s183] sm:$0xff]
        %v185 = vld [vmem:[%s183 + $0x8] sm:$0xff]
        %v186 = vld [vmem:[#allocation2] sm:$0xff]
        %v187 = vld [vmem:[#allocation2 + $0x8] sm:$0xff]
        %v188 = vld [vmem:[#allocation2 + $0x10] sm:$0xff]
        %v189 = vld [vmem:[#allocation2 + $0x18] sm:$0xff]
        %v190 = vld [vmem:[#allocation2 + $0x20] sm:$0xff]
        %v191 = vld [vmem:[#allocation2 + $0x28] sm:$0xff]
        %v192 = vld [vmem:[#allocation2 + $0x30] sm:$0xff]
        %v193 = vld [vmem:[#allocation2 + $0x38] sm:$0xff]
        %v194 = vld [vmem:[#allocation2 + $0x40] sm:$0xff]
        %v195 = vld [vmem:[#allocation2 + $0x48] sm:$0xff]
        %v196 = vld [vmem:[#allocation2 + $0x50] sm:$0xff]
        %v197 = vld [vmem:[#allocation2 + $0x58] sm:$0xff]
        %v198 = vld [vmem:[#allocation2 + $0x60] sm:$0xff]
        %v199 = vld [vmem:[#allocation2 + $0x68] sm:$0xff]
        %v200 = vld [vmem:[#allocation2 + $0x70] sm:$0xff]
        %v201 = vld [vmem:[#allocation2 + $0x78] sm:$0xff]
        %v202 = vld [vmem:[#allocation2 + $0x80] sm:$0xff]
        %v203 = vld [vmem:[#allocation2 + $0x88] sm:$0xff]
        %v204 = vld [vmem:[#allocation2 + $0x90] sm:$0xff]
        %v205 = vld [vmem:[#allocation2 + $0x98] sm:$0xff]
        %v206 = vld [vmem:[#allocation2 + $0xa0] sm:$0xff]
        %v207 = vld [vmem:[#allocation2 + $0xa8] sm:$0xff]
        %v208 = vld [vmem:[#allocation2 + $0xb0] sm:$0xff]
        %v209 = vld [vmem:[#allocation2 + $0xb8] sm:$0xff]
        %v210 = vld [vmem:[#allocation2 + $0xc0] sm:$0x3f]
        %v211 = vld [vmem:[#allocation2 + $0xc8] sm:$0x3f]
        %v212 = vld [vmem:[#allocation2 + $0xd0] sm:$0x3f]
        %v213 = vld [vmem:[#allocation2 + $0xd8] sm:$0x3f]
        %v214 = vld [vmem:[%s183 + $0x1] sm:$0xff]
        %v215 = vld [vmem:[%s183 + $0x9] sm:$0xff]
        %s216 = scalar_lea.vmem [#allocation2], 224
        %v217 = vld [vmem:[%s216] sm:$0xff]
        %v218 = vld [vmem:[%s216 + $0x8] sm:$0xff]
        %v219 = vld [vmem:[%s216 + $0x10] sm:$0xff]
        %v220 = vld [vmem:[%s216 + $0x18] sm:$0xff]
        %v221 = vld [vmem:[%s216 + $0x20] sm:$0xff]
        %v222 = vld [vmem:[%s216 + $0x28] sm:$0xff]
        %v223 = vld [vmem:[%s216 + $0x30] sm:$0xff]
        %v224 = vld [vmem:[%s216 + $0x38] sm:$0xff]
        %v225 = vld [vmem:[%s216 + $0x40] sm:$0xff]
        %v226 = vld [vmem:[%s216 + $0x48] sm:$0xff]
        %v227 = vld [vmem:[%s216 + $0x50] sm:$0xff]
        %v228 = vld [vmem:[%s216 + $0x58] sm:$0xff]
        %v229 = vld [vmem:[%s216 + $0x60] sm:$0xff]
        %v230 = vld [vmem:[%s216 + $0x68] sm:$0xff]
        %v231 = vld [vmem:[%s216 + $0x70] sm:$0xff]
        %v232 = vld [vmem:[%s216 + $0x78] sm:$0xff]
        %v233 = vld [vmem:[%s216 + $0x80] sm:$0xff]
        %v234 = vld [vmem:[%s216 + $0x88] sm:$0xff]
        %v235 = vld [vmem:[%s216 + $0x90] sm:$0xff]
        %v236 = vld [vmem:[%s216 + $0x98] sm:$0xff]
        %v237 = vld [vmem:[%s216 + $0xa0] sm:$0xff]
        %v238 = vld [vmem:[%s216 + $0xa8] sm:$0xff]
        %v239 = vld [vmem:[%s216 + $0xb0] sm:$0xff]
        %v240 = vld [vmem:[%s216 + $0xb8] sm:$0xff]
        %v241 = vld [vmem:[%s216 + $0xc0] sm:$0x3f]
        %v242 = vld [vmem:[%s216 + $0xc8] sm:$0x3f]
        %v243 = vld [vmem:[%s216 + $0xd0] sm:$0x3f]
        %v244 = vld [vmem:[%s216 + $0xd8] sm:$0x3f]
        %vm245 = vcmask 441344
        %v247 = vsel %vm245, %v214, 0
        %v250 = vsel %vm245, %v215, 0
        %vm252 = vcmask 1045504
        %v254 = vsel %vm252, %v241, 0
        %v257 = vsel %vm252, %v242, 0
        %v260 = vsel %vm252, %v243, 0
        %v263 = vsel %vm252, %v244, 0
        %265 = vmatprep.subr.mxu0 %v218
        %266 = vmatpush1.msra.mxu0 %v217
        %267 = vmatprep.subr.mxu0 %v222
        %268 = vmatpush1.msra.mxu0 %v221
        %269 = vmatprep.subr.mxu0 %v226
        %270 = vmatpush1.msra.mxu0 %v225
        %271 = vmatprep.subr.mxu0 %v230
        %272 = vmatpush1.msra.mxu0 %v229
        %273 = vmatprep.subr.mxu0 %v234
        %274 = vmatpush1.msra.mxu0 %v233
        %275 = vmatprep.subr.mxu0 %v238
        %276 = vmatpush1.msra.mxu0 %v237
        %277 = vmatprep.subr.mxu0 %v257
        %278 = vmatpush1.msra.mxu0 %v254
        %279 = vmatprep.subr.mxu0 0.0
        %280 = vmatpush1.msra.mxu0 0.0
        %281 = vmatprep.subr.mxu0 0.0
        %282 = vmatpush1.msra.mxu0 0.0
        %283 = vmatprep.subr.mxu0 0.0
        %284 = vmatpush1.msra.mxu0 0.0
        %285 = vmatprep.subr.mxu0 0.0
        %286 = vmatpush1.msra.mxu0 0.0
        %287 = vmatprep.subr.mxu0 0.0
        %288 = vmatpush1.msra.mxu0 0.0
        %289 = vmatprep.subr.mxu0 0.0
        %290 = vmatpush1.msra.mxu0 0.0
        %291 = vmatprep.subr.mxu0 0.0
        %292 = vmatpush1.msra.mxu0 0.0
        %293 = vmatprep.subr.mxu0 0.0
        %294 = vmatpush1.msra.mxu0 0.0
        %295 = vmatprep.subr.mxu0 0.0
        %296 = vmatpush1.msra.mxu0 0.0
        %297 = vmatprep.subr.mxu0 0.0
        %298 = vmatpush1.msra.mxu0 0.0
        %299 = vmatprep.subr.mxu0 0.0
        %300 = vmatpush1.msra.mxu0 0.0
        %301 = vmatprep.subr.mxu0 0.0
        %302 = vmatpush1.msra.mxu0 0.0
        %303 = vmatprep.subr.mxu0 0.0
        %304 = vmatpush1.msra.mxu0 0.0
        %305 = vmatprep.subr.mxu0 0.0
        %306 = vmatpush1.msra.mxu0 0.0
        %307 = vmatprep.subr.mxu0 0.0
        %308 = vmatpush1.msra.mxu0 0.0
        %309 = vmatprep.subr.mxu0 0.0
        %310 = vmatpush1.msra.mxu0 0.0
        %311 = vmatprep.subr.mxu0 0.0
        %312 = vmatpush1.msra.mxu0 0.0
        %313 = vmatprep.subr.mxu0 0.0
        %314 = vmatpush1.msra.mxu0 0.0
        %315 = vmatprep.subr.mxu0 0.0
        %316 = vmatpush1.msra.mxu0 0.0
        %317 = vmatprep.subr.mxu0 0.0
        %318 = vmatpush1.msra.mxu0 0.0
        %319 = vmatprep.subr.mxu0 0.0
        %320 = vmatpush1.msra.mxu0 0.0
        %321 = vmatprep.subr.mxu0 0.0
        %322 = vmatpush1.msra.mxu0 0.0
        %323 = vmatprep.subr.mxu0 0.0
        %324 = vmatpush1.msra.mxu0 0.0
        %325 = vmatprep.subr.mxu0 0.0
        %326 = vmatpush1.msra.mxu0 0.0
        %327 = vmatprep.subr.mxu0 0.0
        %328 = vmatpush1.msra.mxu0 0.0
        %329 = vmatprep.mubr.f32.mxu0 0.0
        %330 = vmatmul.mubr.f32.gmra.mrb[0].mxu0 %v247
        %v331 = vpop.f32.mrb[0].mxu0
        %v332 = vadd.f32 0.0, %v331
        %v333 = vpop.f32.mrb[0].mxu0
        %v334 = vadd.f32 0.0, %v333
        %335 = vmatprep.mubr.f32.mxu0 0.0
        %336 = vmatmul.mubr.f32.gmra.mrb[0].mxu0 %v250
        %v337 = vpop.f32.mrb[0].mxu0
        %v338 = vadd.f32 0.0, %v337
        %v339 = vpop.f32.mrb[0].mxu0
        %v340 = vadd.f32 0.0, %v339
        %341 = vdwg.mxu0
        %342 = vmatprep.subr.mxu0 %v220
        %343 = vmatpush1.msra.mxu0 %v219
        %344 = vmatprep.subr.mxu0 %v224
        %345 = vmatpush1.msra.mxu0 %v223
        %346 = vmatprep.subr.mxu0 %v228
        %347 = vmatpush1.msra.mxu0 %v227
        %348 = vmatprep.subr.mxu0 %v232
        %349 = vmatpush1.msra.mxu0 %v231
        %350 = vmatprep.subr.mxu0 %v236
        %351 = vmatpush1.msra.mxu0 %v235
        %352 = vmatprep.subr.mxu0 %v240
        %353 = vmatpush1.msra.mxu0 %v239
        %354 = vmatprep.subr.mxu0 %v263
        %355 = vmatpush1.msra.mxu0 %v260
        %356 = vmatprep.subr.mxu0 0.0
        %357 = vmatpush1.msra.mxu0 0.0
        %358 = vmatprep.subr.mxu0 0.0
        %359 = vmatpush1.msra.mxu0 0.0
        %360 = vmatprep.subr.mxu0 0.0
        %361 = vmatpush1.msra.mxu0 0.0
        %362 = vmatprep.subr.mxu0 0.0
        %363 = vmatpush1.msra.mxu0 0.0
        %364 = vmatprep.subr.mxu0 0.0
        %365 = vmatpush1.msra.mxu0 0.0
        %366 = vmatprep.subr.mxu0 0.0
        %367 = vmatpush1.msra.mxu0 0.0
        %368 = vmatprep.subr.mxu0 0.0
        %369 = vmatpush1.msra.mxu0 0.0
        %370 = vmatprep.subr.mxu0 0.0
        %371 = vmatpush1.msra.mxu0 0.0
        %372 = vmatprep.subr.mxu0 0.0
        %373 = vmatpush1.msra.mxu0 0.0
        %374 = vmatprep.subr.mxu0 0.0
        %375 = vmatpush1.msra.mxu0 0.0
        %376 = vmatprep.subr.mxu0 0.0
        %377 = vmatpush1.msra.mxu0 0.0
        %378 = vmatprep.subr.mxu0 0.0
        %379 = vmatpush1.msra.mxu0 0.0
        %380 = vmatprep.subr.mxu0 0.0
        %381 = vmatpush1.msra.mxu0 0.0
        %382 = vmatprep.subr.mxu0 0.0
        %383 = vmatpush1.msra.mxu0 0.0
        %384 = vmatprep.subr.mxu0 0.0
        %385 = vmatpush1.msra.mxu0 0.0
        %386 = vmatprep.subr.mxu0 0.0
        %387 = vmatpush1.msra.mxu0 0.0
        %388 = vmatprep.subr.mxu0 0.0
        %389 = vmatpush1.msra.mxu0 0.0
        %390 = vmatprep.subr.mxu0 0.0
        %391 = vmatpush1.msra.mxu0 0.0
        %392 = vmatprep.subr.mxu0 0.0
        %393 = vmatpush1.msra.mxu0 0.0
        %394 = vmatprep.subr.mxu0 0.0
        %395 = vmatpush1.msra.mxu0 0.0
        %396 = vmatprep.subr.mxu0 0.0
        %397 = vmatpush1.msra.mxu0 0.0
        %398 = vmatprep.subr.mxu0 0.0
        %399 = vmatpush1.msra.mxu0 0.0
        %400 = vmatprep.subr.mxu0 0.0
        %401 = vmatpush1.msra.mxu0 0.0
        %402 = vmatprep.subr.mxu0 0.0
        %403 = vmatpush1.msra.mxu0 0.0
        %404 = vmatprep.subr.mxu0 0.0
        %405 = vmatpush1.msra.mxu0 0.0
        %406 = vmatprep.mubr.f32.mxu0 0.0
        %407 = vmatmul.mubr.f32.gmra.mrb[0].mxu0 %v247
        %v408 = vpop.f32.mrb[0].mxu0
        %v409 = vadd.f32 0.0, %v408
        %v410 = vpop.f32.mrb[0].mxu0
        %v411 = vadd.f32 0.0, %v410
        %412 = vmatprep.mubr.f32.mxu0 0.0
        %413 = vmatmul.mubr.f32.gmra.mrb[0].mxu0 %v250
        %v414 = vpop.f32.mrb[0].mxu0
        %v415 = vadd.f32 0.0, %v414
        %v416 = vpop.f32.mrb[0].mxu0
        %v417 = vadd.f32 0.0, %v416
        %418 = vdwg.mxu0
        %v420 = vsel %vm245, %v184, 0
        %v423 = vsel %vm245, %v185, 0
        %v426 = vsel %vm252, %v210, 0
        %v429 = vsel %vm252, %v211, 0
        %v432 = vsel %vm252, %v212, 0
        %v435 = vsel %vm252, %v213, 0
        %437 = vmatprep.subr.mxu0 %v187
        %438 = vmatpush1.msra.mxu0 %v186
        %439 = vmatprep.subr.mxu0 %v191
        %440 = vmatpush1.msra.mxu0 %v190
        %441 = vmatprep.subr.mxu0 %v195
        %442 = vmatpush1.msra.mxu0 %v194
        %443 = vmatprep.subr.mxu0 %v199
        %444 = vmatpush1.msra.mxu0 %v198
        %445 = vmatprep.subr.mxu0 %v203
        %446 = vmatpush1.msra.mxu0 %v202
        %447 = vmatprep.subr.mxu0 %v207
        %448 = vmatpush1.msra.mxu0 %v206
        %449 = vmatprep.subr.mxu0 %v429
        %450 = vmatpush1.msra.mxu0 %v426
        %451 = vmatprep.subr.mxu0 0.0
        %452 = vmatpush1.msra.mxu0 0.0
        %453 = vmatprep.subr.mxu0 0.0
        %454 = vmatpush1.msra.mxu0 0.0
        %455 = vmatprep.subr.mxu0 0.0
        %456 = vmatpush1.msra.mxu0 0.0
        %457 = vmatprep.subr.mxu0 0.0
        %458 = vmatpush1.msra.mxu0 0.0
        %459 = vmatprep.subr.mxu0 0.0
        %460 = vmatpush1.msra.mxu0 0.0
        %461 = vmatprep.subr.mxu0 0.0
        %462 = vmatpush1.msra.mxu0 0.0
        %463 = vmatprep.subr.mxu0 0.0
        %464 = vmatpush1.msra.mxu0 0.0
        %465 = vmatprep.subr.mxu0 0.0
        %466 = vmatpush1.msra.mxu0 0.0
        %467 = vmatprep.subr.mxu0 0.0
        %468 = vmatpush1.msra.mxu0 0.0
        %469 = vmatprep.subr.mxu0 0.0
        %470 = vmatpush1.msra.mxu0 0.0
        %471 = vmatprep.subr.mxu0 0.0
        %472 = vmatpush1.msra.mxu0 0.0
        %473 = vmatprep.subr.mxu0 0.0
        %474 = vmatpush1.msra.mxu0 0.0
        %475 = vmatprep.subr.mxu0 0.0
        %476 = vmatpush1.msra.mxu0 0.0
        %477 = vmatprep.subr.mxu0 0.0
        %478 = vmatpush1.msra.mxu0 0.0
        %479 = vmatprep.subr.mxu0 0.0
        %480 = vmatpush1.msra.mxu0 0.0
        %481 = vmatprep.subr.mxu0 0.0
        %482 = vmatpush1.msra.mxu0 0.0
        %483 = vmatprep.subr.mxu0 0.0
        %484 = vmatpush1.msra.mxu0 0.0
        %485 = vmatprep.subr.mxu0 0.0
        %486 = vmatpush1.msra.mxu0 0.0
        %487 = vmatprep.subr.mxu0 0.0
        %488 = vmatpush1.msra.mxu0 0.0
        %489 = vmatprep.subr.mxu0 0.0
        %490 = vmatpush1.msra.mxu0 0.0
        %491 = vmatprep.subr.mxu0 0.0
        %492 = vmatpush1.msra.mxu0 0.0
        %493 = vmatprep.subr.mxu0 0.0
        %494 = vmatpush1.msra.mxu0 0.0
        %495 = vmatprep.subr.mxu0 0.0
        %496 = vmatpush1.msra.mxu0 0.0
        %497 = vmatprep.subr.mxu0 0.0
        %498 = vmatpush1.msra.mxu0 0.0
        %499 = vmatprep.subr.mxu0 0.0
        %500 = vmatpush1.msra.mxu0 0.0
        %501 = vmatprep.mubr.f32.mxu0 0.0
        %502 = vmatmul.mubr.f32.gmra.mrb[0].mxu0 %v420
        %v503 = vpop.f32.mrb[0].mxu0
        %v504 = vadd.f32 %v332, %v503
        %v505 = vpop.f32.mrb[0].mxu0
        %v506 = vadd.f32 %v334, %v505
        %507 = vmatprep.mubr.f32.mxu0 0.0
        %508 = vmatmul.mubr.f32.gmra.mrb[0].mxu0 %v423
        %v509 = vpop.f32.mrb[0].mxu0
        %v510 = vadd.f32 %v338, %v509
        %v511 = vpop.f32.mrb[0].mxu0
        %v512 = vadd.f32 %v340, %v511
        %513 = vdwg.mxu0
        %514 = vmatprep.subr.mxu0 %v189
        %515 = vmatpush1.msra.mxu0 %v188
        %516 = vmatprep.subr.mxu0 %v193
        %517 = vmatpush1.msra.mxu0 %v192
        %518 = vmatprep.subr.mxu0 %v197
        %519 = vmatpush1.msra.mxu0 %v196
        %520 = vmatprep.subr.mxu0 %v201
        %521 = vmatpush1.msra.mxu0 %v200
        %522 = vmatprep.subr.mxu0 %v205
        %523 = vmatpush1.msra.mxu0 %v204
        %524 = vmatprep.subr.mxu0 %v209
        %525 = vmatpush1.msra.mxu0 %v208
        %526 = vmatprep.subr.mxu0 %v435
        %527 = vmatpush1.msra.mxu0 %v432
        %528 = vmatprep.subr.mxu0 0.0
        %529 = vmatpush1.msra.mxu0 0.0
        %530 = vmatprep.subr.mxu0 0.0
        %531 = vmatpush1.msra.mxu0 0.0
        %532 = vmatprep.subr.mxu0 0.0
        %533 = vmatpush1.msra.mxu0 0.0
        %534 = vmatprep.subr.mxu0 0.0
        %535 = vmatpush1.msra.mxu0 0.0
        %536 = vmatprep.subr.mxu0 0.0
        %537 = vmatpush1.msra.mxu0 0.0
        %538 = vmatprep.subr.mxu0 0.0
        %539 = vmatpush1.msra.mxu0 0.0
        %540 = vmatprep.subr.mxu0 0.0
        %541 = vmatpush1.msra.mxu0 0.0
        %542 = vmatprep.subr.mxu0 0.0
        %543 = vmatpush1.msra.mxu0 0.0
        %544 = vmatprep.subr.mxu0 0.0
        %545 = vmatpush1.msra.mxu0 0.0
        %546 = vmatprep.subr.mxu0 0.0
        %547 = vmatpush1.msra.mxu0 0.0
        %548 = vmatprep.subr.mxu0 0.0
        %549 = vmatpush1.msra.mxu0 0.0
        %550 = vmatprep.subr.mxu0 0.0
        %551 = vmatpush1.msra.mxu0 0.0
        %552 = vmatprep.subr.mxu0 0.0
        %553 = vmatpush1.msra.mxu0 0.0
        %554 = vmatprep.subr.mxu0 0.0
        %555 = vmatpush1.msra.mxu0 0.0
        %556 = vmatprep.subr.mxu0 0.0
        %557 = vmatpush1.msra.mxu0 0.0
        %558 = vmatprep.subr.mxu0 0.0
        %559 = vmatpush1.msra.mxu0 0.0
        %560 = vmatprep.subr.mxu0 0.0
        %561 = vmatpush1.msra.mxu0 0.0
        %562 = vmatprep.subr.mxu0 0.0
        %563 = vmatpush1.msra.mxu0 0.0
        %564 = vmatprep.subr.mxu0 0.0
        %565 = vmatpush1.msra.mxu0 0.0
        %566 = vmatprep.subr.mxu0 0.0
        %567 = vmatpush1.msra.mxu0 0.0
        %568 = vmatprep.subr.mxu0 0.0
        %569 = vmatpush1.msra.mxu0 0.0
        %570 = vmatprep.subr.mxu0 0.0
        %571 = vmatpush1.msra.mxu0 0.0
        %572 = vmatprep.subr.mxu0 0.0
        %573 = vmatpush1.msra.mxu0 0.0
        %574 = vmatprep.subr.mxu0 0.0
        %575 = vmatpush1.msra.mxu0 0.0
        %576 = vmatprep.subr.mxu0 0.0
        %577 = vmatpush1.msra.mxu0 0.0
        %578 = vmatprep.mubr.f32.mxu0 0.0
        %579 = vmatmul.mubr.f32.gmra.mrb[0].mxu0 %v420
        %v580 = vpop.f32.mrb[0].mxu0
        %v581 = vadd.f32 %v409, %v580
        %v582 = vpop.f32.mrb[0].mxu0
        %v583 = vadd.f32 %v411, %v582
        %584 = vmatprep.mubr.f32.mxu0 0.0
        %585 = vmatmul.mubr.f32.gmra.mrb[0].mxu0 %v423
        %v586 = vpop.f32.mrb[0].mxu0
        %v587 = vadd.f32 %v415, %v586
        %v588 = vpop.f32.mrb[0].mxu0
        %v589 = vadd.f32 %v417, %v588
        %590 = vdwg.mxu0
        %v591 = vld [vmem:[%s183 + $0x2] sm:$0xff]
        %v592 = vld [vmem:[%s183 + $0xa] sm:$0xff]
        %s593 = scalar_lea.vmem [#allocation2], 448
        %v594 = vld [vmem:[%s593] sm:$0xff]
        %v595 = vld [vmem:[%s593 + $0x8] sm:$0xff]
        %v596 = vld [vmem:[%s593 + $0x10] sm:$0xff]
        %v597 = vld [vmem:[%s593 + $0x18] sm:$0xff]
        %v598 = vld [vmem:[%s593 + $0x20] sm:$0xff]
        %v599 = vld [vmem:[%s593 + $0x28] sm:$0xff]
        %v600 = vld [vmem:[%s593 + $0x30] sm:$0xff]
        %v601 = vld [vmem:[%s593 + $0x38] sm:$0xff]
        %v602 = vld [vmem:[%s593 + $0x40] sm:$0xff]
        %v603 = vld [vmem:[%s593 + $0x48] sm:$0xff]
        %v604 = vld [vmem:[%s593 + $0x50] sm:$0xff]
        %v605 = vld [vmem:[%s593 + $0x58] sm:$0xff]
        %v606 = vld [vmem:[%s593 + $0x60] sm:$0xff]
        %v607 = vld [vmem:[%s593 + $0x68] sm:$0xff]
        %v608 = vld [vmem:[%s593 + $0x70] sm:$0xff]
        %v609 = vld [vmem:[%s593 + $0x78] sm:$0xff]
        %v610 = vld [vmem:[%s593 + $0x80] sm:$0xff]
        %v611 = vld [vmem:[%s593 + $0x88] sm:$0xff]
        %v612 = vld [vmem:[%s593 + $0x90] sm:$0xff]
        %v613 = vld [vmem:[%s593 + $0x98] sm:$0xff]
        %v614 = vld [vmem:[%s593 + $0xa0] sm:$0xff]
        %v615 = vld [vmem:[%s593 + $0xa8] sm:$0xff]
        %v616 = vld [vmem:[%s593 + $0xb0] sm:$0xff]
        %v617 = vld [vmem:[%s593 + $0xb8] sm:$0xff]
        %v618 = vld [vmem:[%s593 + $0xc0] sm:$0x3f]
        %v619 = vld [vmem:[%s593 + $0xc8] sm:$0x3f]
        %v620 = vld [vmem:[%s593 + $0xd0] sm:$0x3f]
        %v621 = vld [vmem:[%s593 + $0xd8] sm:$0x3f]
        %v623 = vsel %vm245, %v591, 0
        %v626 = vsel %vm245, %v592, 0
        %v629 = vsel %vm252, %v618, 0
        %v632 = vsel %vm252, %v619, 0
        %v635 = vsel %vm252, %v620, 0
        %v638 = vsel %vm252, %v621, 0
        %640 = vmatprep.subr.mxu0 %v595
        %641 = vmatpush1.msra.mxu0 %v594
        %642 = vmatprep.subr.mxu0 %v599
        %643 = vmatpush1.msra.mxu0 %v598
        %644 = vmatprep.subr.mxu0 %v603
        %645 = vmatpush1.msra.mxu0 %v602
        %646 = vmatprep.subr.mxu0 %v607
        %647 = vmatpush1.msra.mxu0 %v606
        %648 = vmatprep.subr.mxu0 %v611
        %649 = vmatpush1.msra.mxu0 %v610
        %650 = vmatprep.subr.mxu0 %v615
        %651 = vmatpush1.msra.mxu0 %v614
        %652 = vmatprep.subr.mxu0 %v632
        %653 = vmatpush1.msra.mxu0 %v629
        %654 = vmatprep.subr.mxu0 0.0
        %655 = vmatpush1.msra.mxu0 0.0
        %656 = vmatprep.subr.mxu0 0.0
        %657 = vmatpush1.msra.mxu0 0.0
        %658 = vmatprep.subr.mxu0 0.0
        %659 = vmatpush1.msra.mxu0 0.0
        %660 = vmatprep.subr.mxu0 0.0
        %661 = vmatpush1.msra.mxu0 0.0
        %662 = vmatprep.subr.mxu0 0.0
        %663 = vmatpush1.msra.mxu0 0.0
        %664 = vmatprep.subr.mxu0 0.0
        %665 = vmatpush1.msra.mxu0 0.0
        %666 = vmatprep.subr.mxu0 0.0
        %667 = vmatpush1.msra.mxu0 0.0
        %668 = vmatprep.subr.mxu0 0.0
        %669 = vmatpush1.msra.mxu0 0.0
        %670 = vmatprep.subr.mxu0 0.0
        %671 = vmatpush1.msra.mxu0 0.0
        %672 = vmatprep.subr.mxu0 0.0
        %673 = vmatpush1.msra.mxu0 0.0
        %674 = vmatprep.subr.mxu0 0.0
        %675 = vmatpush1.msra.mxu0 0.0
        %676 = vmatprep.subr.mxu0 0.0
        %677 = vmatpush1.msra.mxu0 0.0
        %678 = vmatprep.subr.mxu0 0.0
        %679 = vmatpush1.msra.mxu0 0.0
        %680 = vmatprep.subr.mxu0 0.0
        %681 = vmatpush1.msra.mxu0 0.0
        %682 = vmatprep.subr.mxu0 0.0
        %683 = vmatpush1.msra.mxu0 0.0
        %684 = vmatprep.subr.mxu0 0.0
        %685 = vmatpush1.msra.mxu0 0.0
        %686 = vmatprep.subr.mxu0 0.0
        %687 = vmatpush1.msra.mxu0 0.0
        %688 = vmatprep.subr.mxu0 0.0
        %689 = vmatpush1.msra.mxu0 0.0
        %690 = vmatprep.subr.mxu0 0.0
        %691 = vmatpush1.msra.mxu0 0.0
        %692 = vmatprep.subr.mxu0 0.0
        %693 = vmatpush1.msra.mxu0 0.0
        %694 = vmatprep.subr.mxu0 0.0
        %695 = vmatpush1.msra.mxu0 0.0
        %696 = vmatprep.subr.mxu0 0.0
        %697 = vmatpush1.msra.mxu0 0.0
        %698 = vmatprep.subr.mxu0 0.0
        %699 = vmatpush1.msra.mxu0 0.0
        %700 = vmatprep.subr.mxu0 0.0
        %701 = vmatpush1.msra.mxu0 0.0
        %702 = vmatprep.subr.mxu0 0.0
        %703 = vmatpush1.msra.mxu0 0.0
        %704 = vmatprep.mubr.f32.mxu0 0.0
        %705 = vmatmul.mubr.f32.gmra.mrb[0].mxu0 %v623
        %v706 = vpop.f32.mrb[0].mxu0
        %v707 = vadd.f32 0.0, %v706
        %v708 = vpop.f32.mrb[0].mxu0
        %v709 = vadd.f32 0.0, %v708
        %710 = vmatprep.mubr.f32.mxu0 0.0
        %711 = vmatmul.mubr.f32.gmra.mrb[0].mxu0 %v626
        %v712 = vpop.f32.mrb[0].mxu0
        %v713 = vadd.f32 0.0, %v712
        %v714 = vpop.f32.mrb[0].mxu0
        %v715 = vadd.f32 0.0, %v714
        %716 = vdwg.mxu0
        %717 = vmatprep.subr.mxu0 %v597
        %718 = vmatpush1.msra.mxu0 %v596
        %719 = vmatprep.subr.mxu0 %v601
        %720 = vmatpush1.msra.mxu0 %v600
        %721 = vmatprep.subr.mxu0 %v605
        %722 = vmatpush1.msra.mxu0 %v604
        %723 = vmatprep.subr.mxu0 %v609
        %724 = vmatpush1.msra.mxu0 %v608
        %725 = vmatprep.subr.mxu0 %v613
        %726 = vmatpush1.msra.mxu0 %v612
        %727 = vmatprep.subr.mxu0 %v617
        %728 = vmatpush1.msra.mxu0 %v616
        %729 = vmatprep.subr.mxu0 %v638
        %730 = vmatpush1.msra.mxu0 %v635
        %731 = vmatprep.subr.mxu0 0.0
        %732 = vmatpush1.msra.mxu0 0.0
        %733 = vmatprep.subr.mxu0 0.0
        %734 = vmatpush1.msra.mxu0 0.0
        %735 = vmatprep.subr.mxu0 0.0
        %736 = vmatpush1.msra.mxu0 0.0
        %737 = vmatprep.subr.mxu0 0.0
        %738 = vmatpush1.msra.mxu0 0.0
        %739 = vmatprep.subr.mxu0 0.0
        %740 = vmatpush1.msra.mxu0 0.0
        %741 = vmatprep.subr.mxu0 0.0
        %742 = vmatpush1.msra.mxu0 0.0
        %743 = vmatprep.subr.mxu0 0.0
        %744 = vmatpush1.msra.mxu0 0.0
        %745 = vmatprep.subr.mxu0 0.0
        %746 = vmatpush1.msra.mxu0 0.0
        %747 = vmatprep.subr.mxu0 0.0
        %748 = vmatpush1.msra.mxu0 0.0
        %749 = vmatprep.subr.mxu0 0.0
        %750 = vmatpush1.msra.mxu0 0.0
        %751 = vmatprep.subr.mxu0 0.0
        %752 = vmatpush1.msra.mxu0 0.0
        %753 = vmatprep.subr.mxu0 0.0
        %754 = vmatpush1.msra.mxu0 0.0
        %755 = vmatprep.subr.mxu0 0.0
        %756 = vmatpush1.msra.mxu0 0.0
        %757 = vmatprep.subr.mxu0 0.0
        %758 = vmatpush1.msra.mxu0 0.0
        %759 = vmatprep.subr.mxu0 0.0
        %760 = vmatpush1.msra.mxu0 0.0
        %761 = vmatprep.subr.mxu0 0.0
        %762 = vmatpush1.msra.mxu0 0.0
        %763 = vmatprep.subr.mxu0 0.0
        %764 = vmatpush1.msra.mxu0 0.0
        %765 = vmatprep.subr.mxu0 0.0
        %766 = vmatpush1.msra.mxu0 0.0
        %767 = vmatprep.subr.mxu0 0.0
        %768 = vmatpush1.msra.mxu0 0.0
        %769 = vmatprep.subr.mxu0 0.0
        %770 = vmatpush1.msra.mxu0 0.0
        %771 = vmatprep.subr.mxu0 0.0
        %772 = vmatpush1.msra.mxu0 0.0
        %773 = vmatprep.subr.mxu0 0.0
        %774 = vmatpush1.msra.mxu0 0.0
        %775 = vmatprep.subr.mxu0 0.0
        %776 = vmatpush1.msra.mxu0 0.0
        %777 = vmatprep.subr.mxu0 0.0
        %778 = vmatpush1.msra.mxu0 0.0
        %779 = vmatprep.subr.mxu0 0.0
        %780 = vmatpush1.msra.mxu0 0.0
        %781 = vmatprep.mubr.f32.mxu0 0.0
        %782 = vmatmul.mubr.f32.gmra.mrb[0].mxu0 %v623
        %v783 = vpop.f32.mrb[0].mxu0
        %v784 = vadd.f32 0.0, %v783
        %v785 = vpop.f32.mrb[0].mxu0
        %v786 = vadd.f32 0.0, %v785
        %787 = vmatprep.mubr.f32.mxu0 0.0
        %788 = vmatmul.mubr.f32.gmra.mrb[0].mxu0 %v626
        %v789 = vpop.f32.mrb[0].mxu0
        %v790 = vadd.f32 0.0, %v789
        %v791 = vpop.f32.mrb[0].mxu0
        %v792 = vadd.f32 0.0, %v791
        %793 = vdwg.mxu0
        %v794 = vadd.f32 %v504, %v707
        %v795 = vadd.f32 %v506, %v709
        %v796 = vadd.f32 %v581, %v784
        %v797 = vadd.f32 %v583, %v786
        %v798 = vadd.f32 %v510, %v713
        %v799 = vadd.f32 %v512, %v715
        %v800 = vadd.f32 %v587, %v790
        %v801 = vadd.f32 %v589, %v792
        %v802 = vld [vmem:[%s2] sm:$0xf]
        %v804 = vlaneseq
        %v805 = vshrl.u32 %v804, 7
        %v806 = vsub.s32 0, %v805
        %v807 = vrot.slane %v802, %v806
        %v808 = vlaneseq
        %v809 = vshrl.u32 %v808, 7
        %v810 = vsub.s32 1, %v809
        %v811 = vrot.slane %v802, %v810
        %v812 = vlaneseq
        %v813 = vshrl.u32 %v812, 7
        %v814 = vsub.s32 2, %v813
        %v815 = vrot.slane %v802, %v814
        %v816 = vlaneseq
        %v817 = vshrl.u32 %v816, 7
        %v818 = vsub.s32 3, %v817
        %v819 = vrot.slane %v802, %v818
        %v824 = vadd.f32 %v794, %v807
        %v825 = vadd.f32 %v795, %v811
        %v826 = vadd.f32 %v796, %v815
        %v827 = vadd.f32 %v797, %v819
        %v828 = vadd.f32 %v798, %v807
        %v829 = vadd.f32 %v799, %v811
        %v830 = vadd.f32 %v800, %v815
        %v831 = vadd.f32 %v801, %v819
        %v832 = vmax.f32 %v824, 0.0
        %v833 = vmax.f32 %v825, 0.0
        %v834 = vmax.f32 %v826, 0.0
        %v835 = vmax.f32 %v827, 0.0
        %v836 = vmax.f32 %v828, 0.0
        %v837 = vmax.f32 %v829, 0.0
        %v838 = vmax.f32 %v830, 0.0
        %v839 = vmax.f32 %v831, 0.0
        %840 = vst [vmem:[%s178] sm:$0xff] %v832
        %841 = vst [vmem:[%s178 + $0x8] sm:$0xff] %v833
        %842 = vst [vmem:[%s178 + $0x10] sm:$0xff] %v834
        %843 = vst [vmem:[%s178 + $0x18] sm:$0xff] %v835
        %844 = vst [vmem:[%s178 + $0x20] sm:$0xff] %v836
        %845 = vst [vmem:[%s178 + $0x28] sm:$0xff] %v837
        %846 = vst [vmem:[%s178 + $0x30] sm:$0xff] %v838
        %847 = vst [vmem:[%s178 + $0x38] sm:$0xff] %v839
        %s848 = sand.u32 %s94, 1
        %s849 = scalar_lea.sflag [#allocation4], %s848
        %s850 = sand.u32 %s94, 1
        %s851 = smul.addr %s850, 64
        %s852 = scalar_lea.vmem [#allocation5], %s851
        // Predicated region
        $region37: #{tpu_custom_call.1} parent=31 // pred_check
          %p853 = pneg %p104
        $region38: #{tpu_custom_call.1} parent=31 // pred_check_branch
          %855 = sbr.rel (%p853) target = $region40
        $region39: #{tpu_custom_call.1} parent=31 // pred_region
          %s857 = ssub.s32 1024, 1024
          %858 = vsyncadd %s849, %s857
          %s859 = smul.addr %s18, 8
          %s860 = smul.addr %s859, 128
          %s861 = scalar_lea.hbm %s3, %s860
          %s862 = sshll.u32 %s852, 4
          %s863 = int_to_ptr.vmem [resolvable:$true] %s862
          %868 = dma.vmem_to_hbm [thread:$0]  %s863, 1024, %s861, %s849, 512, 512, 32
        $region40: #{tpu_custom_call.1} parent=31 // pred_fallthru
          _
      $region32: #{tpu_custom_call.1} parent=5 // pred_fallthru
        _
      %p869 = scmp.le.s32.totalorder 2, %s13
      // Predicated region
      $region41: #{tpu_custom_call.1} parent=5 // pred_check
        %p870 = pneg %p869
      $region42: #{tpu_custom_call.1} parent=5 // pred_check_branch
        %872 = sbr.rel (%p870) target = $region44
      $region43: #{tpu_custom_call.1} parent=5 // pred_region
        %s873 = ssub.s32 %s13, 2
        // Predicated region
        $region45: #{tpu_custom_call.1} parent=43 // pred_check
          %p874 = pneg %p110
        $region46: #{tpu_custom_call.1} parent=43 // pred_check_branch
          %876 = sbr.rel (%p874) target = $region48
        $region47: #{tpu_custom_call.1} parent=43 // pred_region
          %s877 = sand.u32 %s95, 1
          %s878 = scalar_lea.sflag [#allocation4], %s877
          %s879 = sand.u32 %s95, 1
          %s880 = smul.addr %s879, 64
          %s881 = scalar_lea.vmem [#allocation5], %s880
          %882 = dma.done %s878, 1024
        $region48: #{tpu_custom_call.1} parent=43 // pred_fallthru
          _
      $region44: #{tpu_custom_call.1} parent=5 // pred_fallthru
        _
    $region6: #{tpu_custom_call.1} parent=1 // loop_footer
      %s17 = sadd.s32 1, %s13
    $region7: #{tpu_custom_call.1} parent=1 // loop_footer_branch
      %12 = sbr.rel target = $region3
    $region8: #{tpu_custom_call.1} parent=1 // loop_exit
      _
    %883 = vsyncpa [#allocation3], 1
    %s884 = scalar_lea.sflag [#allocation3], 1
    %885 = vsyncpa %s884, 1
    %886 = vsyncpa [#allocation4], 1
    %s887 = scalar_lea.sflag [#allocation4], 1
    %888 = vsyncpa %s887, 1

</llo_original>
